<compile_context>
chip_gen: v7x
topology: tpu7x:2x2x1
jax: 0.10.0
libtpu: 0.0.40
codegen_flags: <defaults>
</compile_context>

<pallas_src>
import functools

import numpy as np
import jax
import jax.numpy as jnp
from jax import lax
from jax.experimental import pallas as pl
from jax.experimental.pallas import tpu as pltpu


N_BINS = 15


def _round_up(x, m):
    return -(-x // m) * m


def _ece_bin_kernel(bounds_ref, logits_ref, labels_ref, out_ref, *,
                    n_valid, tile_n, tiles_per_split):
    """Accumulates per-bin [count, sum(conf), sum(acc)] into out_ref (3, n_bins)."""
    # out_ref is resident across grid axis 1 ("arbitrary"); init at first step.
    @pl.when(pl.program_id(1) == 0)
    def _():
        out_ref[...] = jnp.zeros_like(out_ref)

    x = logits_ref[...].astype(jnp.float32)          # (TN, C) f32 in VMEM
    lbl = labels_ref[...]                            # (TN, 1) int32

    # softmax confidence: max prob = exp(0) / sum(exp(x - max)) = 1 / sumexp
    m = jnp.max(x, axis=1, keepdims=True)            # (TN, 1)
    e = jnp.exp(x - m)
    s = jnp.sum(e, axis=1, keepdims=True)            # (TN, 1)
    conf = 1.0 / s                                   # exact divide (bin-edge sensitive)

    # argmax with first-max tie behavior (matches torch.max)
    c = x.shape[1]
    cls_iota = lax.broadcasted_iota(jnp.int32, x.shape, 1)
    pred = jnp.min(jnp.where(x == m, cls_iota, c), axis=1, keepdims=True)
    acc = (pred == lbl).astype(jnp.float32)          # (TN, 1)

    # mask padded rows (global row index >= n_valid)
    start = (pl.program_id(0) * tiles_per_split + pl.program_id(1)) * tile_n
    row = lax.broadcasted_iota(jnp.int32, (tile_n, 1), 0) + start
    valid = row < n_valid                            # (TN, 1) bool

    lowers = bounds_ref[0:1, :]                      # (1, n_bins)
    uppers = bounds_ref[1:2, :]                      # (1, n_bins)
    in_bin = ((conf > lowers) & (conf <= uppers) & valid).astype(jnp.float32)

    # Fuse the three reductions into one small MXU matmul:
    #   S = [1, conf, acc] (TN, 3);  stats = S^T @ in_bin -> (3, n_bins)
    S = jnp.concatenate([jnp.ones_like(conf), conf, acc], axis=1)
    stats = lax.dot_general(S, in_bin, (((0,), (0,)), ((), ())),
                            preferred_element_type=jnp.float32)
    out_ref[...] += stats                            # single accumulator RMW


def ece_loss(logits, labels, n_bins=N_BINS, tile_n=512, num_splits=2):
    """Expected Calibration Error. logits: (N, C) float (any dtype), labels: (N,) int."""
    n, c = logits.shape
    labels2d = labels.astype(jnp.int32).reshape(n, 1)

    # Tile sizing: clamp to what this N actually needs, keep multiple of 8.
    per_split = -(-n // num_splits)
    tile_n_eff = max(8, min(int(tile_n), _round_up(per_split, 8)))
    tiles_per_split = -(-per_split // tile_n_eff)
    n_padded = num_splits * tiles_per_split * tile_n_eff

    if n_padded != n:
        pad = n_padded - n
        logits = jnp.pad(logits, ((0, pad), (0, 0)))
        labels2d = jnp.pad(labels2d, ((0, pad), (0, 0)), constant_values=-1)

    # Bin boundaries as a tiny input (NOT a captured kernel constant).
    bounds_np = np.linspace(0.0, 1.0, n_bins + 1).astype(np.float32)
    bounds = jnp.asarray(np.stack([bounds_np[:-1], bounds_np[1:]], axis=0))  # (2, n_bins)

    kernel = functools.partial(
        _ece_bin_kernel, n_valid=n, tile_n=tile_n_eff,
        tiles_per_split=tiles_per_split)

    stats = pl.pallas_call(
        kernel,
        out_shape=jax.ShapeDtypeStruct((num_splits, 3, n_bins), jnp.float32),
        grid_spec=pltpu.PrefetchScalarGridSpec(
            num_scalar_prefetch=0,
            grid=(num_splits, tiles_per_split),
            in_specs=[
                pl.BlockSpec((2, n_bins), lambda s, i: (0, 0)),
                pl.BlockSpec((tile_n_eff, c),
                             lambda s, i: (s * tiles_per_split + i, 0)),
                pl.BlockSpec((tile_n_eff, 1),
                             lambda s, i: (s * tiles_per_split + i, 0)),
            ],
            # per-split accumulator slab; leading dim squeezed in-kernel
            out_specs=pl.BlockSpec((None, 3, n_bins), lambda s, i: (s, 0, 0)),
        ),
        compiler_params=pltpu.CompilerParams(
            dimension_semantics=("parallel", "arbitrary"),
            vmem_limit_bytes=32 * 1024 * 1024,
        ),
    )(bounds, logits, labels2d)

    # Tiny epilogue in JAX: combine per-split slabs and take the weighted gap.
    agg = jnp.sum(stats, axis=0)                     # (3, n_bins)
    counts, sum_conf, sum_acc = agg[0], agg[1], agg[2]
    prob_in_bin = counts / n
    nonempty = counts > 0
    safe = jnp.where(nonempty, counts, 1.0)
    gap = jnp.abs(sum_conf / safe - sum_acc / safe)
    ece = jnp.sum(jnp.where(nonempty, gap * prob_in_bin, 0.0))
    return ece.reshape(1)  # matches torch: tensor of shape (1,)


def _ece_reference(logits, labels, n_bins=N_BINS):
    # pure-numpy reference mirroring the PyTorch module
    logits = np.asarray(logits, dtype=np.float32)
    labels = np.asarray(labels)
    x = logits - logits.max(axis=1, keepdims=True)
    sm = np.exp(x) / np.exp(x).sum(axis=1, keepdims=True)
    conf = sm.max(axis=1)
    pred = sm.argmax(axis=1)
    acc = (pred == labels).astype(np.float32)
    bounds = np.linspace(0.0, 1.0, n_bins + 1).astype(np.float32)
    tce = 0.0
    for lo, hi in zip(bounds[:-1], bounds[1:]):
        in_bin = (conf > lo) & (conf <= hi)
        prob = in_bin.mean()
        if prob > 0:
            tce += abs(conf[in_bin].mean() - acc[in_bin].mean()) * prob
    return np.array([tce], dtype=np.float32)


if __name__ == "__main__":
    key = jax.random.PRNGKey(0)
    k1, k2 = jax.random.split(key)

    # ragged N on purpose (exercises the pad + mask path), small class count
    N, C = 200, 10
    logits = jax.random.normal(k1, (N, C), dtype=jnp.float32) * 3.0
    labels = jax.random.randint(k2, (N,), 0, C, dtype=jnp.int32)

    out = ece_loss(logits, labels)
    out = jax.block_until_ready(out)

    ref = _ece_reference(logits, labels)
    np.testing.assert_allclose(np.asarray(out), ref, rtol=5e-5, atol=1e-6)

    print("KERNEL_OK")
</pallas_src>

<mosaic_0001>
module attributes {stable_mosaic.version = 11 : i64} {
  func.func @_ece_bin_kernel(%arg0: i32, %arg1: i32, %arg2: memref<2x15xf32, #tpu.memory_space<vmem>>, %arg3: memref<104x10xf32, #tpu.memory_space<vmem>>, %arg4: memref<104x1xi32, #tpu.memory_space<vmem>>, %arg5: memref<1x3x15xf32, #tpu.memory_space<vmem>>) attributes {dimension_semantics = [#tpu.dimension_semantics<parallel>, #tpu.dimension_semantics<arbitrary>], iteration_bounds = array<i64: 2, 1>, scalar_prefetch = 0 : i64, scratch_operands = 0 : i64, tpu.core_type = #tpu.core_type<tc>, window_params = [{pipeline_mode = #tpu.pipeline_mode<synchronous>, transform_indices = @transform_0, window_bounds = array<i64: 2, 15>}, {transform_indices = @transform_1, window_bounds = array<i64: 104, 10>}, {transform_indices = @transform_2, window_bounds = array<i64: 104, 1>}, {transform_indices = @transform_3, window_bounds = array<i64: 1, 3, 15>}]} {
    %c0_i32 = arith.constant 0 : i32
    %0 = arith.cmpi eq, %arg1, %c0_i32 : i32
    %1 = arith.extui %0 : i1 to i32
    %c0_i32_0 = arith.constant 0 : i32
    %2 = arith.cmpi ne, %1, %c0_i32_0 : i32
    scf.if %2 {
      %cst_18 = arith.constant 0.000000e+00 : f32
      %54 = vector.broadcast %cst_18 : f32 to vector<3x15xf32>
      %c0_19 = arith.constant 0 : index
      %c0_20 = arith.constant 0 : index
      %c0_21 = arith.constant 0 : index
      %55 = vector.load %arg5[%c0_19, %c0_20, %c0_21] : memref<1x3x15xf32, #tpu.memory_space<vmem>>, vector<1x3x15xf32>
      %56 = vector.shape_cast %55 : vector<1x3x15xf32> to vector<3x15xf32>
      %57 = vector.shape_cast %54 : vector<3x15xf32> to vector<1x3x15xf32>
      tpu.vector_store %arg5[%c0_19, %c0_20, %c0_21], %57 {strides = array<i32>} : memref<1x3x15xf32, #tpu.memory_space<vmem>>, vector<1x3x15xf32>,
    } else {
    }
    %c0 = arith.constant 0 : index
    %c0_1 = arith.constant 0 : index
    %3 = vector.load %arg3[%c0, %c0_1] : memref<104x10xf32, #tpu.memory_space<vmem>>, vector<104x10xf32>
    %c0_2 = arith.constant 0 : index
    %c0_3 = arith.constant 0 : index
    %4 = vector.load %arg4[%c0_2, %c0_3] : memref<104x1xi32, #tpu.memory_space<vmem>>, vector<104x1xi32>
    %cst = arith.constant dense<0xFF800000> : vector<104xf32>
    %5 = vector.multi_reduction <maximumf>, %3, %cst [1] : vector<104x10xf32> to vector<104xf32>
    %6 = vector.shape_cast %5 : vector<104xf32> to vector<104x1xf32>
    %7 = vector.broadcast %6 : vector<104x1xf32> to vector<104x10xf32>
    %8 = arith.subf %3, %7 : vector<104x10xf32>
    %9 = math.exp %8 : vector<104x10xf32>
    %cst_4 = arith.constant dense<0.000000e+00> : vector<104xf32>
    %10 = vector.multi_reduction <add>, %9, %cst_4 [1] : vector<104x10xf32> to vector<104xf32>
    %11 = vector.shape_cast %10 : vector<104xf32> to vector<104x1xf32>
    %cst_5 = arith.constant 1.000000e+00 : f32
    %12 = vector.broadcast %cst_5 : f32 to vector<104x1xf32>
    %13 = arith.divf %12, %11 : vector<104x1xf32>
    %14 = tpu.iota {dimensions = array<i32: 1>} : vector<104x10xi32>
    %15 = vector.broadcast %6 : vector<104x1xf32> to vector<104x10xf32>
    %16 = arith.cmpf oeq, %3, %15 : vector<104x10xf32>
    %c10_i32 = arith.constant 10 : i32
    %17 = vector.broadcast %c10_i32 : i32 to vector<104x10xi32>
    %18 = arith.select %16, %14, %17 : vector<104x10xi1>, vector<104x10xi32>
    %cst_6 = arith.constant dense<2147483647> : vector<104xi32>
    %19 = vector.multi_reduction <minsi>, %18, %cst_6 [1] : vector<104x10xi32> to vector<104xi32>
    %20 = vector.shape_cast %19 : vector<104xi32> to vector<104x1xi32>
    %21 = arith.cmpi eq, %20, %4 : vector<104x1xi32>
    %22 = arith.extui %21 : vector<104x1xi1> to vector<104x1xi32>
    %23 = arith.sitofp %22 : vector<104x1xi32> to vector<104x1xf32>
    %c1_i32 = arith.constant 1 : i32
    %24 = arith.muli %arg0, %c1_i32 : i32
    %25 = arith.addi %24, %arg1 : i32
    %c104_i32 = arith.constant 104 : i32
    %26 = arith.muli %25, %c104_i32 : i32
    %27 = tpu.iota {dimensions = array<i32: 0>} : vector<104x1xi32>
    %28 = vector.broadcast %26 : i32 to vector<104x1xi32>
    %29 = arith.addi %27, %28 : vector<104x1xi32>
    %c200_i32 = arith.constant 200 : i32
    %30 = vector.broadcast %c200_i32 : i32 to vector<104x1xi32>
    %31 = arith.cmpi slt, %29, %30 : vector<104x1xi32>
    %c0_7 = arith.constant 0 : index
    %c0_8 = arith.constant 0 : index
    %32 = vector.load %arg2[%c0_7, %c0_8] : memref<2x15xf32, #tpu.memory_space<vmem>>, vector<1x15xf32>
    %c1 = arith.constant 1 : index
    %c0_9 = arith.constant 0 : index
    %33 = vector.load %arg2[%c1, %c0_9] : memref<2x15xf32, #tpu.memory_space<vmem>>, vector<1x15xf32>
    %34 = vector.broadcast %13 : vector<104x1xf32> to vector<104x15xf32>
    %35 = vector.broadcast %32 : vector<1x15xf32> to vector<104x15xf32>
    %36 = arith.cmpf ogt, %34, %35 : vector<104x15xf32>
    %37 = vector.broadcast %13 : vector<104x1xf32> to vector<104x15xf32>
    %38 = vector.broadcast %33 : vector<1x15xf32> to vector<104x15xf32>
    %39 = arith.cmpf ole, %37, %38 : vector<104x15xf32>
    %40 = arith.andi %36, %39 : vector<104x15xi1>
    %41 = vector.broadcast %31 : vector<104x1xi1> to vector<104x15xi1>
    %42 = arith.andi %40, %41 : vector<104x15xi1>
    %43 = arith.extui %42 : vector<104x15xi1> to vector<104x15xi32>
    %44 = arith.sitofp %43 : vector<104x15xi32> to vector<104x15xf32>
    %cst_10 = arith.constant 1.000000e+00 : f32
    %45 = vector.broadcast %cst_10 : f32 to vector<104x1xf32>
    %46 = tpu.concatenate %45, %13, %23 in 1 : vector<104x1xf32>, vector<104x1xf32>, vector<104x1xf32> -> vector<104x3xf32>
    %cst_11 = arith.constant dense<0.000000e+00> : vector<3x15xf32>
    %47 = tpu.matmul %46, %44, %cst_11 {dimension_numbers = #tpu.dot_dimension_numbers<[0], [0], [1], [1], [0, 1, 1, 1], [], []>} : vector<104x3xf32>, vector<104x15xf32>, vector<3x15xf32> -> vector<3x15xf32>
    %c0_12 = arith.constant 0 : index
    %c0_13 = arith.constant 0 : index
    %c0_14 = arith.constant 0 : index
    %48 = vector.load %arg5[%c0_12, %c0_13, %c0_14] : memref<1x3x15xf32, #tpu.memory_space<vmem>>, vector<1x3x15xf32>
    %49 = vector.shape_cast %48 : vector<1x3x15xf32> to vector<3x15xf32>
    %50 = arith.addf %49, %47 : vector<3x15xf32>
    %c0_15 = arith.constant 0 : index
    %c0_16 = arith.constant 0 : index
    %c0_17 = arith.constant 0 : index
    %51 = vector.load %arg5[%c0_15, %c0_16, %c0_17] : memref<1x3x15xf32, #tpu.memory_space<vmem>>, vector<1x3x15xf32>
    %52 = vector.shape_cast %51 : vector<1x3x15xf32> to vector<3x15xf32>
    %53 = vector.shape_cast %50 : vector<3x15xf32> to vector<1x3x15xf32>
    tpu.vector_store %arg5[%c0_15, %c0_16, %c0_17], %53 {strides = array<i32>} : memref<1x3x15xf32, #tpu.memory_space<vmem>>, vector<1x3x15xf32>,
    return
  }
  func.func @transform_0(%arg0: i32, %arg1: i32) -> (i32, i32) {
    %c0_i32 = arith.constant 0 : i32
    %c0_i32_0 = arith.constant 0 : i32
    %c0_i32_1 = arith.constant 0 : i32
    return %c0_i32, %c0_i32_0 : i32, i32
  }
  func.func @transform_1(%arg0: i32, %arg1: i32) -> (i32, i32) {
    %c1_i32 = arith.constant 1 : i32
    %0 = arith.muli %arg0, %c1_i32 : i32
    %1 = arith.addi %0, %arg1 : i32
    %c0_i32 = arith.constant 0 : i32
    %c0_i32_0 = arith.constant 0 : i32
    return %1, %c0_i32 : i32, i32
  }
  func.func @transform_2(%arg0: i32, %arg1: i32) -> (i32, i32) {
    %c1_i32 = arith.constant 1 : i32
    %0 = arith.muli %arg0, %c1_i32 : i32
    %1 = arith.addi %0, %arg1 : i32
    %c0_i32 = arith.constant 0 : i32
    %c0_i32_0 = arith.constant 0 : i32
    return %1, %c0_i32 : i32, i32
  }
  func.func @transform_3(%arg0: i32, %arg1: i32) -> (i32, i32, i32) {
    %c0_i32 = arith.constant 0 : i32
    %c0_i32_0 = arith.constant 0 : i32
    %c0_i32_1 = arith.constant 0 : i32
    return %arg0, %c0_i32, %c0_i32_0 : i32, i32, i32
  }
}

</mosaic_0001>

<llo_original>
// kernel: tpu_custom_call.1
$region0: #{tpu_custom_call.1}
  #allocation0 [shape = 'u32[]', space=smem, size = 0x4, offset = 0x4, fixed_abs, tag = 'smem constant byte address 0x4 - core index']
  #allocation1 [shape = 'u32[144,128]{1,0:T(1,128)}', space=vmem, size = 0x12000, scoped, tag = 'internal scratch']
  %s0 = inlined_call_operand.vmem [shape: f32[2,15], index: 0, kind: input, shape index: {}]
  %s1 = inlined_call_operand.vmem [shape: f32[208,10], index: 1, kind: input, shape index: {}]
  %s2 = inlined_call_operand.vmem [shape: s32[208,1], index: 2, kind: input, shape index: {}]
  %s3 = inlined_call_operand.vmem [shape: f32[2,3,15], index: 3, kind: output, shape index: {}]
  %s4 = sld [smem:[#allocation0]]
  $region49: #{tpu_custom_call.1} parent=0
    _
  %s6 = ssub.s32 1, %s4
  %s7 = scalar_select 0, %s6, %s4
  loop: start=0, step=1, limit=4
  $region2: #{tpu_custom_call.1} parent=0 // loop_pre_header
    _
  $region3: #{tpu_custom_call.1} parent=0 // loop_header
    %s9 = sphi 0, %s13
    %p10 = scmp.ge.s32.totalorder %s9, 4
    %s16 = sphi 0, %s28
    %s17 = sphi 0, %s24
    %s18 = sphi 0, %s16
    %s19 = sphi 0, %s17
    %s20 = sphi 0, %s18
    %s21 = sphi 0, %s19
    %s29 = sphi 0, %s29
    %s31 = sphi 0, %s29
    %s32 = sphi 0, %s31
    %s46 = sphi 0, %s32
    %s54 = sphi 0, %s56
    %s57 = sphi 0, %s54
    %s58 = sphi 0, %s57
    %s74 = sphi 0, %s58
    %s82 = sphi 0, %s84
    %s85 = sphi 0, %s82
    %s86 = sphi 0, %s85
    %s102 = sphi 0, %s86
    %s108 = sphi 0, %s110
    %s111 = sphi 0, %s108
    %s112 = sphi 0, %s111
    %s128 = sphi 0, %s112
  $region4: #{tpu_custom_call.1} parent=0 // loop_header_branch
    %12 = sbr.rel (%p10) target = $region8
  $region5: #{tpu_custom_call.1} parent=0 // loop_body
    %s14 = ssub.s32 %s9, 1
    %s15 = ssub.s32 %s9, 2
    %s22 = sadd.s32 1, %s17
    %p23 = scmp.ge.s32.totalorder %s22, 1
    %s24 = scalar_select %p23, 0, %s22
    %s25 = sadd.s32 1, %s16
    %s26 = scalar_select %p23, %s25, %s16
    %p27 = scmp.ge.s32.totalorder %s26, 2
    %s28 = scalar_select %p27, 0, %s26
    %s30 = sadd.s32 %s29, 1
    %p33 = scmp.eq.s32.totalorder %s9, 1
    %p34 = scmp.ne.s32.totalorder %s29, %s31
    %p35 = scmp.eq.s32.totalorder %s9, 0
    %p36 = por %p34, %p35
    %p37 = scmp.ne.s32.totalorder %s29, %s31
    %p38 = scmp.eq.s32.totalorder %s14, 1
    %p39 = por %p37, %p38
    %p40 = scmp.ne.s32.totalorder %s31, %s32
    %p41 = scmp.eq.s32.totalorder %s14, 0
    %p42 = por %p40, %p41
    %p43 = scmp.ne.s32.totalorder %s31, %s32
    %p44 = scmp.eq.s32.totalorder %s15, 1
    %p45 = por %p43, %p44
    %p47 = scmp.ne.s32.totalorder %s32, %s46
    %p48 = scmp.eq.s32.totalorder %s15, 0
    %p49 = por %p47, %p48
    %s50 = sadd.s32 %s16, %s17
    %s51 = sadd.s32 %s28, %s24
    %s52 = ssub.s32 %s50, %s51
    %p53 = scmp.eq.s32.totalorder %s52, 0
    %s55 = sadd.s32 %s54, 1
    %s56 = scalar_select %p53, %s54, %s55
    %p59 = pneg %p53
    %p60 = scmp.eq.s32.totalorder %s9, 1
    %p61 = por %p59, %p60
    %p62 = scmp.ne.s32.totalorder %s54, %s57
    %p63 = scmp.eq.s32.totalorder %s9, 0
    %p64 = por %p62, %p63
    %p65 = scmp.ne.s32.totalorder %s54, %s57
    %p66 = scmp.eq.s32.totalorder %s14, 1
    %p67 = por %p65, %p66
    %p68 = scmp.ne.s32.totalorder %s57, %s58
    %p69 = scmp.eq.s32.totalorder %s14, 0
    %p70 = por %p68, %p69
    %p71 = scmp.ne.s32.totalorder %s57, %s58
    %p72 = scmp.eq.s32.totalorder %s15, 1
    %p73 = por %p71, %p72
    %p75 = scmp.ne.s32.totalorder %s58, %s74
    %p76 = scmp.eq.s32.totalorder %s15, 0
    %p77 = por %p75, %p76
    %s78 = sadd.s32 %s16, %s17
    %s79 = sadd.s32 %s28, %s24
    %s80 = ssub.s32 %s78, %s79
    %p81 = scmp.eq.s32.totalorder %s80, 0
    %s83 = sadd.s32 %s82, 1
    %s84 = scalar_select %p81, %s82, %s83
    %p87 = pneg %p81
    %p88 = scmp.eq.s32.totalorder %s9, 1
    %p89 = por %p87, %p88
    %p90 = scmp.ne.s32.totalorder %s82, %s85
    %p91 = scmp.eq.s32.totalorder %s9, 0
    %p92 = por %p90, %p91
    %p93 = scmp.ne.s32.totalorder %s82, %s85
    %p94 = scmp.eq.s32.totalorder %s14, 1
    %p95 = por %p93, %p94
    %p96 = scmp.ne.s32.totalorder %s85, %s86
    %p97 = scmp.eq.s32.totalorder %s14, 0
    %p98 = por %p96, %p97
    %p99 = scmp.ne.s32.totalorder %s85, %s86
    %p100 = scmp.eq.s32.totalorder %s15, 1
    %p101 = por %p99, %p100
    %p103 = scmp.ne.s32.totalorder %s86, %s102
    %p104 = scmp.eq.s32.totalorder %s15, 0
    %p105 = por %p103, %p104
    %s106 = ssub.s32 %s16, %s28
    %p107 = scmp.eq.s32.totalorder %s106, 0
    %s109 = sadd.s32 %s108, 1
    %s110 = scalar_select %p107, %s108, %s109
    %p113 = pneg %p107
    %p114 = scmp.eq.s32.totalorder %s9, 1
    %p115 = por %p113, %p114
    %p116 = scmp.ne.s32.totalorder %s108, %s111
    %p117 = scmp.eq.s32.totalorder %s9, 0
    %p118 = por %p116, %p117
    %p119 = scmp.ne.s32.totalorder %s108, %s111
    %p120 = scmp.eq.s32.totalorder %s14, 1
    %p121 = por %p119, %p120
    %p122 = scmp.ne.s32.totalorder %s111, %s112
    %p123 = scmp.eq.s32.totalorder %s14, 0
    %p124 = por %p122, %p123
    %p125 = scmp.ne.s32.totalorder %s111, %s112
    %p126 = scmp.eq.s32.totalorder %s15, 1
    %p127 = por %p125, %p126
    %p129 = scmp.ne.s32.totalorder %s112, %s128
    %p130 = scmp.eq.s32.totalorder %s15, 0
    %p131 = por %p129, %p130
    %p132 = scmp.le.s32.totalorder 1, %s9
    %p133 = scmp.lt.s32.totalorder %s9, 3
    %p134 = pnand %p132, %p133
    %p135 = pneg %p134
    // Predicated region
    $region9: #{tpu_custom_call.1} parent=5 // pred_check
      _
    $region10: #{tpu_custom_call.1} parent=5 // pred_check_branch
      %137 = sbr.rel (%p134) target = $region12
    $region11: #{tpu_custom_call.1} parent=5 // pred_region
      %s138 = ssub.s32 %s9, 1
      // Predicated region
      $region13: #{tpu_custom_call.1} parent=11 // pred_check
        %p139 = pneg %p42
      $region14: #{tpu_custom_call.1} parent=11 // pred_check_branch
        %141 = sbr.rel (%p139) target = $region16
      $region15: #{tpu_custom_call.1} parent=11 // pred_region
        _
      $region16: #{tpu_custom_call.1} parent=11 // pred_fallthru
        _
    $region12: #{tpu_custom_call.1} parent=5 // pred_fallthru
      _
    %p142 = scmp.lt.s32.totalorder %s9, 2
    // Predicated region
    $region17: #{tpu_custom_call.1} parent=5 // pred_check
      %p143 = pneg %p142
    $region18: #{tpu_custom_call.1} parent=5 // pred_check_branch
      %145 = sbr.rel (%p143) target = $region20
    $region19: #{tpu_custom_call.1} parent=5 // pred_region
      // Predicated region
      $region21: #{tpu_custom_call.1} parent=19 // pred_check
        %p146 = pneg %p64
      $region22: #{tpu_custom_call.1} parent=19 // pred_check_branch
        %148 = sbr.rel (%p146) target = $region24
      $region23: #{tpu_custom_call.1} parent=19 // pred_region
        %s149 = sadd.s32 %s16, %s17
        %s150 = smul.u32 13, %s149
        %p151 = scmp.lt.s32.totalorder %s150, 25
        %s152 = scalar_select %p151, %s150, 25
        %s153 = smul.addr %s152, 8
        %s154 = scalar_lea.vmem %s1, %s153
        %s155 = sadd.s32 %s16, %s17
        %s156 = smul.u32 13, %s155
      $region24: #{tpu_custom_call.1} parent=19 // pred_fallthru
        _
      // Predicated region
      $region25: #{tpu_custom_call.1} parent=19 // pred_check
        %p157 = pneg %p92
      $region26: #{tpu_custom_call.1} parent=19 // pred_check_branch
        %159 = sbr.rel (%p157) target = $region28
      $region27: #{tpu_custom_call.1} parent=19 // pred_region
        %s160 = sadd.s32 %s16, %s17
        %s161 = smul.u32 13, %s160
        %p162 = scmp.lt.s32.totalorder %s161, 25
        %s163 = scalar_select %p162, %s161, 25
        %s164 = smul.addr %s163, 8
        %s165 = scalar_lea.vmem %s2, %s164
        %s166 = sadd.s32 %s16, %s17
        %s167 = smul.u32 13, %s166
      $region28: #{tpu_custom_call.1} parent=19 // pred_fallthru
        _
    $region20: #{tpu_custom_call.1} parent=5 // pred_fallthru
      _
    %p168 = scmp.le.s32.totalorder 1, %s9
    %p169 = scmp.lt.s32.totalorder %s9, 3
    %p170 = pnand %p168, %p169
    %p171 = pneg %p170
    // Predicated region
    $region29: #{tpu_custom_call.1} parent=5 // pred_check
      _
    $region30: #{tpu_custom_call.1} parent=5 // pred_check_branch
      %173 = sbr.rel (%p170) target = $region32
    $region31: #{tpu_custom_call.1} parent=5 // pred_region
      %s174 = ssub.s32 %s9, 1
      %p175 = pneg %p42
      %p176 = pneg %p39
      %s177 = sadd.s32 %s18, %s19
      %s178 = smul.u32 13, %s177
      %p179 = scmp.lt.s32.totalorder %s178, 25
      %s180 = scalar_select %p179, %s178, 25
      %s181 = smul.addr %s180, 8
      %s182 = scalar_lea.vmem %s1, %s181
      %p183 = pneg %p70
      %p184 = pneg %p67
      %s185 = sadd.s32 %s18, %s19
      %s186 = smul.u32 13, %s185
      %p187 = scmp.lt.s32.totalorder %s186, 25
      %s188 = scalar_select %p187, %s186, 25
      %s189 = smul.addr %s188, 8
      %s190 = scalar_lea.vmem %s2, %s189
      %p191 = pneg %p98
      %p192 = pneg %p95
      %p193 = pneg %p124
      %p194 = pneg %p121
      %p195 = scmp.lt.s32.totalorder %s18, 1
      %s196 = scalar_select %p195, %s18, 1
      %s197 = smul.addr %s196, 4
      %s198 = scalar_lea.vmem %s3, %s197
      %s199 = sadd.s32 %s18, %s19
      %s200 = smul.u32 13, %s199
      %p201 = scmp.lt.s32.totalorder %s200, 25
      %s202 = scalar_select %p201, %s200, 25
      %s203 = smul.addr %s202, 8
      %s204 = scalar_lea.vmem %s1, %s203
      %s205 = sadd.s32 %s18, %s19
      %s206 = smul.u32 13, %s205
      %s207 = sadd.s32 %s18, %s19
      %s208 = smul.u32 13, %s207
      %p209 = scmp.lt.s32.totalorder %s208, 25
      %s210 = scalar_select %p209, %s208, 25
      %s211 = smul.addr %s210, 8
      %s212 = scalar_lea.vmem %s2, %s211
      %s213 = sadd.s32 %s18, %s19
      %s214 = smul.u32 13, %s213
      %p215 = scmp.lt.s32.totalorder %s18, 1
      %s216 = scalar_select %p215, %s18, 1
      %s217 = smul.addr %s216, 4
      %s218 = scalar_lea.vmem %s3, %s217
      %p219 = scmp.eq.s32.totalorder %s19, 0
      // Predicated region
      $region33: #{tpu_custom_call.1} parent=31 // pred_check
        %p220 = pneg %p219
      $region34: #{tpu_custom_call.1} parent=31 // pred_check_branch
        %222 = sbr.rel (%p220) target = $region36
      $region35: #{tpu_custom_call.1} parent=31 // pred_region
        %vm223 = vcmask 116736
        %224 = vst.msk [vmem:[%s218] sm:$0x7] %vm223, 0.0
      $region36: #{tpu_custom_call.1} parent=31 // pred_fallthru
        _
      %v225 = vld [vmem:[%s204] sm:$0xff]
      %v226 = vld [vmem:[%s204 + $0x8] sm:$0xff]
      %v227 = vld [vmem:[%s204 + $0x10] sm:$0xff]
      %v228 = vld [vmem:[%s204 + $0x18] sm:$0xff]
      %v229 = vld [vmem:[%s204 + $0x20] sm:$0xff]
      %v230 = vld [vmem:[%s204 + $0x28] sm:$0xff]
      %v231 = vld [vmem:[%s204 + $0x30] sm:$0xff]
      %v232 = vld [vmem:[%s204 + $0x38] sm:$0xff]
      %v233 = vld [vmem:[%s204 + $0x40] sm:$0xff]
      %v234 = vld [vmem:[%s204 + $0x48] sm:$0xff]
      %v235 = vld [vmem:[%s204 + $0x50] sm:$0xff]
      %v236 = vld [vmem:[%s204 + $0x58] sm:$0xff]
      %v237 = vld [vmem:[%s204 + $0x60] sm:$0xff]
      %v238 = vld [vmem:[%s212] sm:$0xff]
      %v239 = vld [vmem:[%s212 + $0x8] sm:$0xff]
      %v240 = vld [vmem:[%s212 + $0x10] sm:$0xff]
      %v241 = vld [vmem:[%s212 + $0x18] sm:$0xff]
      %v242 = vld [vmem:[%s212 + $0x20] sm:$0xff]
      %v243 = vld [vmem:[%s212 + $0x28] sm:$0xff]
      %v244 = vld [vmem:[%s212 + $0x30] sm:$0xff]
      %v245 = vld [vmem:[%s212 + $0x38] sm:$0xff]
      %v246 = vld [vmem:[%s212 + $0x40] sm:$0xff]
      %v247 = vld [vmem:[%s212 + $0x48] sm:$0xff]
      %v248 = vld [vmem:[%s212 + $0x50] sm:$0xff]
      %v249 = vld [vmem:[%s212 + $0x58] sm:$0xff]
      %v250 = vld [vmem:[%s212 + $0x60] sm:$0xff]
      %vm251 = vcmask 80896
      %v252 = vsel %vm251, %v225, -inf
      %253 = vmax.xlane.f32.xlu0 %v252
      %v254 = vpop.xlane.xlu0 %253
      %v255 = vsel %vm251, %v226, -inf
      %256 = vmax.xlane.f32.xlu0 %v255
      %v257 = vpop.xlane.xlu0 %256
      %v258 = vsel %vm251, %v227, -inf
      %259 = vmax.xlane.f32.xlu0 %v258
      %v260 = vpop.xlane.xlu0 %259
      %v261 = vsel %vm251, %v228, -inf
      %262 = vmax.xlane.f32.xlu0 %v261
      %v263 = vpop.xlane.xlu0 %262
      %v264 = vsel %vm251, %v229, -inf
      %265 = vmax.xlane.f32.xlu0 %v264
      %v266 = vpop.xlane.xlu0 %265
      %v267 = vsel %vm251, %v230, -inf
      %268 = vmax.xlane.f32.xlu0 %v267
      %v269 = vpop.xlane.xlu0 %268
      %v270 = vsel %vm251, %v231, -inf
      %271 = vmax.xlane.f32.xlu0 %v270
      %v272 = vpop.xlane.xlu0 %271
      %v273 = vsel %vm251, %v232, -inf
      %274 = vmax.xlane.f32.xlu0 %v273
      %v275 = vpop.xlane.xlu0 %274
      %v276 = vsel %vm251, %v233, -inf
      %277 = vmax.xlane.f32.xlu0 %v276
      %v278 = vpop.xlane.xlu0 %277
      %v279 = vsel %vm251, %v234, -inf
      %280 = vmax.xlane.f32.xlu0 %v279
      %v281 = vpop.xlane.xlu0 %280
      %v282 = vsel %vm251, %v235, -inf
      %283 = vmax.xlane.f32.xlu0 %v282
      %v284 = vpop.xlane.xlu0 %283
      %v285 = vsel %vm251, %v236, -inf
      %286 = vmax.xlane.f32.xlu0 %v285
      %v287 = vpop.xlane.xlu0 %286
      %v288 = vsel %vm251, %v237, -inf
      %289 = vmax.xlane.f32.xlu0 %v288
      %v290 = vpop.xlane.xlu0 %289
      %v291 = vsub.f32 %v225, %v254
      %v292 = vsub.f32 %v226, %v257
      %v293 = vsub.f32 %v227, %v260
      %v294 = vsub.f32 %v228, %v263
      %v295 = vsub.f32 %v229, %v266
      %v296 = vsub.f32 %v230, %v269
      %v297 = vsub.f32 %v231, %v272
      %v298 = vsub.f32 %v232, %v275
      %v299 = vsub.f32 %v233, %v278
      %v300 = vsub.f32 %v234, %v281
      %v301 = vsub.f32 %v235, %v284
      %v302 = vsub.f32 %v236, %v287
      %v303 = vsub.f32 %v237, %v290
      %v304 = vmul.f32 %v291, 1.442695
      %v305 = vpow.pop %v304
      %v306 = vmul.f32 %v292, 1.442695
      %v307 = vpow.pop %v306
      %v308 = vmul.f32 %v293, 1.442695
      %v309 = vpow.pop %v308
      %v310 = vmul.f32 %v294, 1.442695
      %v311 = vpow.pop %v310
      %v312 = vmul.f32 %v295, 1.442695
      %v313 = vpow.pop %v312
      %v314 = vmul.f32 %v296, 1.442695
      %v315 = vpow.pop %v314
      %v316 = vmul.f32 %v297, 1.442695
      %v317 = vpow.pop %v316
      %v318 = vmul.f32 %v298, 1.442695
      %v319 = vpow.pop %v318
      %v320 = vmul.f32 %v299, 1.442695
      %v321 = vpow.pop %v320
      %v322 = vmul.f32 %v300, 1.442695
      %v323 = vpow.pop %v322
      %v324 = vmul.f32 %v301, 1.442695
      %v325 = vpow.pop %v324
      %v326 = vmul.f32 %v302, 1.442695
      %v327 = vpow.pop %v326
      %v328 = vmul.f32 %v303, 1.442695
      %v329 = vpow.pop %v328
      %v330 = vsel %vm251, %v305, 0.0
      %331 = vadd.xlane.f32.xlu0 %v330
      %v332 = vpop.xlane.xlu0 %331
      %v333 = vsel %vm251, %v307, 0.0
      %334 = vadd.xlane.f32.xlu0 %v333
      %v335 = vpop.xlane.xlu0 %334
      %v336 = vsel %vm251, %v309, 0.0
      %337 = vadd.xlane.f32.xlu0 %v336
      %v338 = vpop.xlane.xlu0 %337
      %v339 = vsel %vm251, %v311, 0.0
      %340 = vadd.xlane.f32.xlu0 %v339
      %v341 = vpop.xlane.xlu0 %340
      %v342 = vsel %vm251, %v313, 0.0
      %343 = vadd.xlane.f32.xlu0 %v342
      %v344 = vpop.xlane.xlu0 %343
      %v345 = vsel %vm251, %v315, 0.0
      %346 = vadd.xlane.f32.xlu0 %v345
      %v347 = vpop.xlane.xlu0 %346
      %v348 = vsel %vm251, %v317, 0.0
      %349 = vadd.xlane.f32.xlu0 %v348
      %v350 = vpop.xlane.xlu0 %349
      %v351 = vsel %vm251, %v319, 0.0
      %352 = vadd.xlane.f32.xlu0 %v351
      %v353 = vpop.xlane.xlu0 %352
      %v354 = vsel %vm251, %v321, 0.0
      %355 = vadd.xlane.f32.xlu0 %v354
      %v356 = vpop.xlane.xlu0 %355
      %v357 = vsel %vm251, %v323, 0.0
      %358 = vadd.xlane.f32.xlu0 %v357
      %v359 = vpop.xlane.xlu0 %358
      %v360 = vsel %vm251, %v325, 0.0
      %361 = vadd.xlane.f32.xlu0 %v360
      %v362 = vpop.xlane.xlu0 %361
      %v363 = vsel %vm251, %v327, 0.0
      %364 = vadd.xlane.f32.xlu0 %v363
      %v365 = vpop.xlane.xlu0 %364
      %v366 = vsel %vm251, %v329, 0.0
      %367 = vadd.xlane.f32.xlu0 %v366
      %v368 = vpop.xlane.xlu0 %367
      %v369 = vrcp.pop %v332
      %v370 = vmul.f32 1.0, %v369
      %v371 = vrcp.pop %v335
      %v372 = vmul.f32 1.0, %v371
      %v373 = vrcp.pop %v338
      %v374 = vmul.f32 1.0, %v373
      %v375 = vrcp.pop %v341
      %v376 = vmul.f32 1.0, %v375
      %v377 = vrcp.pop %v344
      %v378 = vmul.f32 1.0, %v377
      %v379 = vrcp.pop %v347
      %v380 = vmul.f32 1.0, %v379
      %v381 = vrcp.pop %v350
      %v382 = vmul.f32 1.0, %v381
      %v383 = vrcp.pop %v353
      %v384 = vmul.f32 1.0, %v383
      %v385 = vrcp.pop %v356
      %v386 = vmul.f32 1.0, %v385
      %v387 = vrcp.pop %v359
      %v388 = vmul.f32 1.0, %v387
      %v389 = vrcp.pop %v362
      %v390 = vmul.f32 1.0, %v389
      %v391 = vrcp.pop %v365
      %v392 = vmul.f32 1.0, %v391
      %v393 = vrcp.pop %v368
      %v394 = vmul.f32 1.0, %v393
      %v395 = vlaneseq
      %v396 = vand.u32 %v395, 127
      %vm397 = vcmp.eq.f32.partialorder %v225, %v254
      %vm398 = vcmp.eq.f32.partialorder %v226, %v257
      %vm399 = vcmp.eq.f32.partialorder %v227, %v260
      %vm400 = vcmp.eq.f32.partialorder %v228, %v263
      %vm401 = vcmp.eq.f32.partialorder %v229, %v266
      %vm402 = vcmp.eq.f32.partialorder %v230, %v269
      %vm403 = vcmp.eq.f32.partialorder %v231, %v272
      %vm404 = vcmp.eq.f32.partialorder %v232, %v275
      %vm405 = vcmp.eq.f32.partialorder %v233, %v278
      %vm406 = vcmp.eq.f32.partialorder %v234, %v281
      %vm407 = vcmp.eq.f32.partialorder %v235, %v284
      %vm408 = vcmp.eq.f32.partialorder %v236, %v287
      %vm409 = vcmp.eq.f32.partialorder %v237, %v290
      %v410 = vsel %vm397, %v396, 10
      %v411 = vsel %vm398, %v396, 10
      %v412 = vsel %vm399, %v396, 10
      %v413 = vsel %vm400, %v396, 10
      %v414 = vsel %vm401, %v396, 10
      %v415 = vsel %vm402, %v396, 10
      %v416 = vsel %vm403, %v396, 10
      %v417 = vsel %vm404, %v396, 10
      %v418 = vsel %vm405, %v396, 10
      %v419 = vsel %vm406, %v396, 10
      %v420 = vsel %vm407, %v396, 10
      %v421 = vsel %vm408, %v396, 10
      %v422 = vsel %vm409, %v396, 10
      %v423 = vsel %vm251, %v410, 2147483647
      %v424 = vand.u32 %v423, 65535
      %v425 = vshra.s32 %v423, 16
      %v426 = vcvt.s32.f32 %v424
      %v427 = vcvt.s32.f32 %v425
      %428 = vmin.xlane.f32.xlu0 %v427
      %v429 = vpop.xlane.xlu0 %428
      %vm430 = vcmp.eq.f32.partialorder %v427, %v429
      %v431 = vsel %vm430, %v426, inf
      %432 = vmin.xlane.f32.xlu0 %v431
      %v433 = vpop.xlane.xlu0 %432
      %v434 = vcvt.f32.s32 %v433
      %v435 = vcvt.f32.s32 %v429
      %v436 = vshll.u32 %v435, 16
      %v437 = vadd.s32 %v436, %v434
      %v438 = vsel %vm251, %v411, 2147483647
      %v439 = vand.u32 %v438, 65535
      %v440 = vshra.s32 %v438, 16
      %v441 = vcvt.s32.f32 %v439
      %v442 = vcvt.s32.f32 %v440
      %443 = vmin.xlane.f32.xlu0 %v442
      %v444 = vpop.xlane.xlu0 %443
      %vm445 = vcmp.eq.f32.partialorder %v442, %v444
      %v446 = vsel %vm445, %v441, inf
      %447 = vmin.xlane.f32.xlu0 %v446
      %v448 = vpop.xlane.xlu0 %447
      %v449 = vcvt.f32.s32 %v448
      %v450 = vcvt.f32.s32 %v444
      %v451 = vshll.u32 %v450, 16
      %v452 = vadd.s32 %v451, %v449
      %v453 = vsel %vm251, %v412, 2147483647
      %v454 = vand.u32 %v453, 65535
      %v455 = vshra.s32 %v453, 16
      %v456 = vcvt.s32.f32 %v454
      %v457 = vcvt.s32.f32 %v455
      %458 = vmin.xlane.f32.xlu0 %v457
      %v459 = vpop.xlane.xlu0 %458
      %vm460 = vcmp.eq.f32.partialorder %v457, %v459
      %v461 = vsel %vm460, %v456, inf
      %462 = vmin.xlane.f32.xlu0 %v461
      %v463 = vpop.xlane.xlu0 %462
      %v464 = vcvt.f32.s32 %v463
      %v465 = vcvt.f32.s32 %v459
      %v466 = vshll.u32 %v465, 16
      %v467 = vadd.s32 %v466, %v464
      %v468 = vsel %vm251, %v413, 2147483647
      %v469 = vand.u32 %v468, 65535
      %v470 = vshra.s32 %v468, 16
      %v471 = vcvt.s32.f32 %v469
      %v472 = vcvt.s32.f32 %v470
      %473 = vmin.xlane.f32.xlu0 %v472
      %v474 = vpop.xlane.xlu0 %473
      %vm475 = vcmp.eq.f32.partialorder %v472, %v474
      %v476 = vsel %vm475, %v471, inf
      %477 = vmin.xlane.f32.xlu0 %v476
      %v478 = vpop.xlane.xlu0 %477
      %v479 = vcvt.f32.s32 %v478
      %v480 = vcvt.f32.s32 %v474
      %v481 = vshll.u32 %v480, 16
      %v482 = vadd.s32 %v481, %v479
      %v483 = vsel %vm251, %v414, 2147483647
      %v484 = vand.u32 %v483, 65535
      %v485 = vshra.s32 %v483, 16
      %v486 = vcvt.s32.f32 %v484
      %v487 = vcvt.s32.f32 %v485
      %488 = vmin.xlane.f32.xlu0 %v487
      %v489 = vpop.xlane.xlu0 %488
      %vm490 = vcmp.eq.f32.partialorder %v487, %v489
      %v491 = vsel %vm490, %v486, inf
      %492 = vmin.xlane.f32.xlu0 %v491
      %v493 = vpop.xlane.xlu0 %492
      %v494 = vcvt.f32.s32 %v493
      %v495 = vcvt.f32.s32 %v489
      %v496 = vshll.u32 %v495, 16
      %v497 = vadd.s32 %v496, %v494
      %v498 = vsel %vm251, %v415, 2147483647
      %v499 = vand.u32 %v498, 65535
      %v500 = vshra.s32 %v498, 16
      %v501 = vcvt.s32.f32 %v499
      %v502 = vcvt.s32.f32 %v500
      %503 = vmin.xlane.f32.xlu0 %v502
      %v504 = vpop.xlane.xlu0 %503
      %vm505 = vcmp.eq.f32.partialorder %v502, %v504
      %v506 = vsel %vm505, %v501, inf
      %507 = vmin.xlane.f32.xlu0 %v506
      %v508 = vpop.xlane.xlu0 %507
      %v509 = vcvt.f32.s32 %v508
      %v510 = vcvt.f32.s32 %v504
      %v511 = vshll.u32 %v510, 16
      %v512 = vadd.s32 %v511, %v509
      %v513 = vsel %vm251, %v416, 2147483647
      %v514 = vand.u32 %v513, 65535
      %v515 = vshra.s32 %v513, 16
      %v516 = vcvt.s32.f32 %v514
      %v517 = vcvt.s32.f32 %v515
      %518 = vmin.xlane.f32.xlu0 %v517
      %v519 = vpop.xlane.xlu0 %518
      %vm520 = vcmp.eq.f32.partialorder %v517, %v519
      %v521 = vsel %vm520, %v516, inf
      %522 = vmin.xlane.f32.xlu0 %v521
      %v523 = vpop.xlane.xlu0 %522
      %v524 = vcvt.f32.s32 %v523
      %v525 = vcvt.f32.s32 %v519
      %v526 = vshll.u32 %v525, 16
      %v527 = vadd.s32 %v526, %v524
      %v528 = vsel %vm251, %v417, 2147483647
      %v529 = vand.u32 %v528, 65535
      %v530 = vshra.s32 %v528, 16
      %v531 = vcvt.s32.f32 %v529
      %v532 = vcvt.s32.f32 %v530
      %533 = vmin.xlane.f32.xlu0 %v532
      %v534 = vpop.xlane.xlu0 %533
      %vm535 = vcmp.eq.f32.partialorder %v532, %v534
      %v536 = vsel %vm535, %v531, inf
      %537 = vmin.xlane.f32.xlu0 %v536
      %v538 = vpop.xlane.xlu0 %537
      %v539 = vcvt.f32.s32 %v538
      %v540 = vcvt.f32.s32 %v534
      %v541 = vshll.u32 %v540, 16
      %v542 = vadd.s32 %v541, %v539
      %v543 = vsel %vm251, %v418, 2147483647
      %v544 = vand.u32 %v543, 65535
      %v545 = vshra.s32 %v543, 16
      %v546 = vcvt.s32.f32 %v544
      %v547 = vcvt.s32.f32 %v545
      %548 = vmin.xlane.f32.xlu0 %v547
      %v549 = vpop.xlane.xlu0 %548
      %vm550 = vcmp.eq.f32.partialorder %v547, %v549
      %v551 = vsel %vm550, %v546, inf
      %552 = vmin.xlane.f32.xlu0 %v551
      %v553 = vpop.xlane.xlu0 %552
      %v554 = vcvt.f32.s32 %v553
      %v555 = vcvt.f32.s32 %v549
      %v556 = vshll.u32 %v555, 16
      %v557 = vadd.s32 %v556, %v554
      %v558 = vsel %vm251, %v419, 2147483647
      %v559 = vand.u32 %v558, 65535
      %v560 = vshra.s32 %v558, 16
      %v561 = vcvt.s32.f32 %v559
      %v562 = vcvt.s32.f32 %v560
      %563 = vmin.xlane.f32.xlu0 %v562
      %v564 = vpop.xlane.xlu0 %563
      %vm565 = vcmp.eq.f32.partialorder %v562, %v564
      %v566 = vsel %vm565, %v561, inf
      %567 = vmin.xlane.f32.xlu0 %v566
      %v568 = vpop.xlane.xlu0 %567
      %v569 = vcvt.f32.s32 %v568
      %v570 = vcvt.f32.s32 %v564
      %v571 = vshll.u32 %v570, 16
      %v572 = vadd.s32 %v571, %v569
      %v573 = vsel %vm251, %v420, 2147483647
      %v574 = vand.u32 %v573, 65535
      %v575 = vshra.s32 %v573, 16
      %v576 = vcvt.s32.f32 %v574
      %v577 = vcvt.s32.f32 %v575
      %578 = vmin.xlane.f32.xlu0 %v577
      %v579 = vpop.xlane.xlu0 %578
      %vm580 = vcmp.eq.f32.partialorder %v577, %v579
      %v581 = vsel %vm580, %v576, inf
      %582 = vmin.xlane.f32.xlu0 %v581
      %v583 = vpop.xlane.xlu0 %582
      %v584 = vcvt.f32.s32 %v583
      %v585 = vcvt.f32.s32 %v579
      %v586 = vshll.u32 %v585, 16
      %v587 = vadd.s32 %v586, %v584
      %v588 = vsel %vm251, %v421, 2147483647
      %v589 = vand.u32 %v588, 65535
      %v590 = vshra.s32 %v588, 16
      %v591 = vcvt.s32.f32 %v589
      %v592 = vcvt.s32.f32 %v590
      %593 = vmin.xlane.f32.xlu0 %v592
      %v594 = vpop.xlane.xlu0 %593
      %vm595 = vcmp.eq.f32.partialorder %v592, %v594
      %v596 = vsel %vm595, %v591, inf
      %597 = vmin.xlane.f32.xlu0 %v596
      %v598 = vpop.xlane.xlu0 %597
      %v599 = vcvt.f32.s32 %v598
      %v600 = vcvt.f32.s32 %v594
      %v601 = vshll.u32 %v600, 16
      %v602 = vadd.s32 %v601, %v599
      %v603 = vsel %vm251, %v422, 2147483647
      %v604 = vand.u32 %v603, 65535
      %v605 = vshra.s32 %v603, 16
      %v606 = vcvt.s32.f32 %v604
      %v607 = vcvt.s32.f32 %v605
      %608 = vmin.xlane.f32.xlu0 %v607
      %v609 = vpop.xlane.xlu0 %608
      %vm610 = vcmp.eq.f32.partialorder %v607, %v609
      %v611 = vsel %vm610, %v606, inf
      %612 = vmin.xlane.f32.xlu0 %v611
      %v613 = vpop.xlane.xlu0 %612
      %v614 = vcvt.f32.s32 %v613
      %v615 = vcvt.f32.s32 %v609
      %v616 = vshll.u32 %v615, 16
      %v617 = vadd.s32 %v616, %v614
      %vm618 = vcmp.eq.s32.totalorder %v437, %v238
      %vm619 = vcmp.eq.s32.totalorder %v452, %v239
      %vm620 = vcmp.eq.s32.totalorder %v467, %v240
      %vm621 = vcmp.eq.s32.totalorder %v482, %v241
      %vm622 = vcmp.eq.s32.totalorder %v497, %v242
      %vm623 = vcmp.eq.s32.totalorder %v512, %v243
      %vm624 = vcmp.eq.s32.totalorder %v527, %v244
      %vm625 = vcmp.eq.s32.totalorder %v542, %v245
      %vm626 = vcmp.eq.s32.totalorder %v557, %v246
      %vm627 = vcmp.eq.s32.totalorder %v572, %v247
      %vm628 = vcmp.eq.s32.totalorder %v587, %v248
      %vm629 = vcmp.eq.s32.totalorder %v602, %v249
      %vm630 = vcmp.eq.s32.totalorder %v617, %v250
      %v631 = vsel %vm618, 1, 0
      %v632 = vsel %vm619, 1, 0
      %v633 = vsel %vm620, 1, 0
      %v634 = vsel %vm621, 1, 0
      %v635 = vsel %vm622, 1, 0
      %v636 = vsel %vm623, 1, 0
      %v637 = vsel %vm624, 1, 0
      %v638 = vsel %vm625, 1, 0
      %v639 = vsel %vm626, 1, 0
      %v640 = vsel %vm627, 1, 0
      %v641 = vsel %vm628, 1, 0
      %v642 = vsel %vm629, 1, 0
      %v643 = vsel %vm630, 1, 0
      %v644 = vcvt.s32.f32 %v631
      %v645 = vcvt.s32.f32 %v632
      %v646 = vcvt.s32.f32 %v633
      %v647 = vcvt.s32.f32 %v634
      %v648 = vcvt.s32.f32 %v635
      %v649 = vcvt.s32.f32 %v636
      %v650 = vcvt.s32.f32 %v637
      %v651 = vcvt.s32.f32 %v638
      %v652 = vcvt.s32.f32 %v639
      %v653 = vcvt.s32.f32 %v640
      %v654 = vcvt.s32.f32 %v641
      %v655 = vcvt.s32.f32 %v642
      %v656 = vcvt.s32.f32 %v643
      %s657 = sadd.s32 %s18, %s19
      %s658 = smul.u32 %s657, 104
      %v659 = vlaneseq
      %v660 = vshrl.u32 %v659, 7
      %v661 = vadd.s32 %v660, 8
      %v662 = vadd.s32 %v660, 16
      %v663 = vadd.s32 %v660, 24
      %v664 = vadd.s32 %v660, 32
      %v665 = vadd.s32 %v660, 40
      %v666 = vadd.s32 %v660, 48
      %v667 = vadd.s32 %v660, 56
      %v668 = vadd.s32 %v660, 64
      %v669 = vadd.s32 %v660, 72
      %v670 = vadd.s32 %v660, 80
      %v671 = vadd.s32 %v660, 88
      %v672 = vadd.s32 %v660, 96
      %v673 = vstv %s658
      %v674 = vadd.s32 %v660, %v673
      %v675 = vadd.s32 %v661, %v673
      %v676 = vadd.s32 %v662, %v673
      %v677 = vadd.s32 %v663, %v673
      %v678 = vadd.s32 %v664, %v673
      %v679 = vadd.s32 %v665, %v673
      %v680 = vadd.s32 %v666, %v673
      %v681 = vadd.s32 %v667, %v673
      %v682 = vadd.s32 %v668, %v673
      %v683 = vadd.s32 %v669, %v673
      %v684 = vadd.s32 %v670, %v673
      %v685 = vadd.s32 %v671, %v673
      %v686 = vadd.s32 %v672, %v673
      %vm687 = vcmp.lt.s32.totalorder %v674, 200
      %vm688 = vcmp.lt.s32.totalorder %v675, 200
      %vm689 = vcmp.lt.s32.totalorder %v676, 200
      %vm690 = vcmp.lt.s32.totalorder %v677, 200
      %vm691 = vcmp.lt.s32.totalorder %v678, 200
      %vm692 = vcmp.lt.s32.totalorder %v679, 200
      %vm693 = vcmp.lt.s32.totalorder %v680, 200
      %vm694 = vcmp.lt.s32.totalorder %v681, 200
      %vm695 = vcmp.lt.s32.totalorder %v682, 200
      %vm696 = vcmp.lt.s32.totalorder %v683, 200
      %vm697 = vcmp.lt.s32.totalorder %v684, 200
      %vm698 = vcmp.lt.s32.totalorder %v685, 200
      %vm699 = vcmp.lt.s32.totalorder %v686, 200
      %v700 = vld [vmem:[%s0] sm:$0x1]
      %v701 = vld [vmem:[%s0 + $0x1] sm:$0x1]
      %v702 = vlaneseq
      %v703 = vshrl.u32 %v702, 7
      %v704 = vsub.s32 0, %v703
      %v705 = vrot.slane %v700, %v704
      %vm706 = vcmp.gt.f32.partialorder %v370, %v705
      %vm707 = vcmp.gt.f32.partialorder %v372, %v705
      %vm708 = vcmp.gt.f32.partialorder %v374, %v705
      %vm709 = vcmp.gt.f32.partialorder %v376, %v705
      %vm710 = vcmp.gt.f32.partialorder %v378, %v705
      %vm711 = vcmp.gt.f32.partialorder %v380, %v705
      %vm712 = vcmp.gt.f32.partialorder %v382, %v705
      %vm713 = vcmp.gt.f32.partialorder %v384, %v705
      %vm714 = vcmp.gt.f32.partialorder %v386, %v705
      %vm715 = vcmp.gt.f32.partialorder %v388, %v705
      %vm716 = vcmp.gt.f32.partialorder %v390, %v705
      %vm717 = vcmp.gt.f32.partialorder %v392, %v705
      %vm718 = vcmp.gt.f32.partialorder %v394, %v705
      %v719 = vlaneseq
      %v720 = vshrl.u32 %v719, 7
      %v721 = vsub.s32 0, %v720
      %v722 = vrot.slane %v701, %v721
      %vm723 = vcmp.le.f32.partialorder %v370, %v722
      %vm724 = vcmp.le.f32.partialorder %v372, %v722
      %vm725 = vcmp.le.f32.partialorder %v374, %v722
      %vm726 = vcmp.le.f32.partialorder %v376, %v722
      %vm727 = vcmp.le.f32.partialorder %v378, %v722
      %vm728 = vcmp.le.f32.partialorder %v380, %v722
      %vm729 = vcmp.le.f32.partialorder %v382, %v722
      %vm730 = vcmp.le.f32.partialorder %v384, %v722
      %vm731 = vcmp.le.f32.partialorder %v386, %v722
      %vm732 = vcmp.le.f32.partialorder %v388, %v722
      %vm733 = vcmp.le.f32.partialorder %v390, %v722
      %vm734 = vcmp.le.f32.partialorder %v392, %v722
      %vm735 = vcmp.le.f32.partialorder %v394, %v722
      %vm736 = vmand %vm706, %vm723
      %vm737 = vmand %vm707, %vm724
      %vm738 = vmand %vm708, %vm725
      %vm739 = vmand %vm709, %vm726
      %vm740 = vmand %vm710, %vm727
      %vm741 = vmand %vm711, %vm728
      %vm742 = vmand %vm712, %vm729
      %vm743 = vmand %vm713, %vm730
      %vm744 = vmand %vm714, %vm731
      %vm745 = vmand %vm715, %vm732
      %vm746 = vmand %vm716, %vm733
      %vm747 = vmand %vm717, %vm734
      %vm748 = vmand %vm718, %vm735
      %v749 = vsel %vm687, 1, 0
      %v750 = vsel %vm688, 1, 0
      %v751 = vsel %vm689, 1, 0
      %v752 = vsel %vm690, 1, 0
      %v753 = vsel %vm691, 1, 0
      %v754 = vsel %vm692, 1, 0
      %v755 = vsel %vm693, 1, 0
      %v756 = vsel %vm694, 1, 0
      %v757 = vsel %vm695, 1, 0
      %v758 = vsel %vm696, 1, 0
      %v759 = vsel %vm697, 1, 0
      %v760 = vsel %vm698, 1, 0
      %v761 = vsel %vm699, 1, 0
      %vm762 = vcmp.eq.s32.totalorder %v749, 1
      %vm763 = vcmp.eq.s32.totalorder %v750, 1
      %vm764 = vcmp.eq.s32.totalorder %v751, 1
      %vm765 = vcmp.eq.s32.totalorder %v752, 1
      %vm766 = vcmp.eq.s32.totalorder %v753, 1
      %vm767 = vcmp.eq.s32.totalorder %v754, 1
      %vm768 = vcmp.eq.s32.totalorder %v755, 1
      %vm769 = vcmp.eq.s32.totalorder %v756, 1
      %vm770 = vcmp.eq.s32.totalorder %v757, 1
      %vm771 = vcmp.eq.s32.totalorder %v758, 1
      %vm772 = vcmp.eq.s32.totalorder %v759, 1
      %vm773 = vcmp.eq.s32.totalorder %v760, 1
      %vm774 = vcmp.eq.s32.totalorder %v761, 1
      %vm775 = vmand %vm736, %vm762
      %vm776 = vmand %vm737, %vm763
      %vm777 = vmand %vm738, %vm764
      %vm778 = vmand %vm739, %vm765
      %vm779 = vmand %vm740, %vm766
      %vm780 = vmand %vm741, %vm767
      %vm781 = vmand %vm742, %vm768
      %vm782 = vmand %vm743, %vm769
      %vm783 = vmand %vm744, %vm770
      %vm784 = vmand %vm745, %vm771
      %vm785 = vmand %vm746, %vm772
      %vm786 = vmand %vm747, %vm773
      %vm787 = vmand %vm748, %vm774
      %v788 = vsel %vm775, 1, 0
      %v789 = vsel %vm776, 1, 0
      %v790 = vsel %vm777, 1, 0
      %v791 = vsel %vm778, 1, 0
      %v792 = vsel %vm779, 1, 0
      %v793 = vsel %vm780, 1, 0
      %v794 = vsel %vm781, 1, 0
      %v795 = vsel %vm782, 1, 0
      %v796 = vsel %vm783, 1, 0
      %v797 = vsel %vm784, 1, 0
      %v798 = vsel %vm785, 1, 0
      %v799 = vsel %vm786, 1, 0
      %v800 = vsel %vm787, 1, 0
      %v801 = vcvt.s32.f32 %v788
      %v802 = vcvt.s32.f32 %v789
      %v803 = vcvt.s32.f32 %v790
      %v804 = vcvt.s32.f32 %v791
      %v805 = vcvt.s32.f32 %v792
      %v806 = vcvt.s32.f32 %v793
      %v807 = vcvt.s32.f32 %v794
      %v808 = vcvt.s32.f32 %v795
      %v809 = vcvt.s32.f32 %v796
      %v810 = vcvt.s32.f32 %v797
      %v811 = vcvt.s32.f32 %v798
      %v812 = vcvt.s32.f32 %v799
      %v813 = vcvt.s32.f32 %v800
      %827 = vrot.lane.b32.xlu0 %v644, 2
      %v828 = vpop.permute.xlu0 %827
      %829 = vrot.lane.b32.xlu0 %v645, 2
      %v830 = vpop.permute.xlu0 %829
      %831 = vrot.lane.b32.xlu0 %v646, 2
      %v832 = vpop.permute.xlu0 %831
      %833 = vrot.lane.b32.xlu0 %v647, 2
      %v834 = vpop.permute.xlu0 %833
      %835 = vrot.lane.b32.xlu0 %v648, 2
      %v836 = vpop.permute.xlu0 %835
      %837 = vrot.lane.b32.xlu0 %v649, 2
      %v838 = vpop.permute.xlu0 %837
      %839 = vrot.lane.b32.xlu0 %v650, 2
      %v840 = vpop.permute.xlu0 %839
      %841 = vrot.lane.b32.xlu0 %v651, 2
      %v842 = vpop.permute.xlu0 %841
      %843 = vrot.lane.b32.xlu0 %v652, 2
      %v844 = vpop.permute.xlu0 %843
      %845 = vrot.lane.b32.xlu0 %v653, 2
      %v846 = vpop.permute.xlu0 %845
      %847 = vrot.lane.b32.xlu0 %v654, 2
      %v848 = vpop.permute.xlu0 %847
      %849 = vrot.lane.b32.xlu0 %v655, 2
      %v850 = vpop.permute.xlu0 %849
      %851 = vrot.lane.b32.xlu0 %v656, 2
      %v852 = vpop.permute.xlu0 %851
      %vm866 = vcmask 7168
      %v867 = vsel %vm866, 1.0, %v370
      %v868 = vsel %vm866, 1.0, %v372
      %v869 = vsel %vm866, 1.0, %v374
      %v870 = vsel %vm866, 1.0, %v376
      %v871 = vsel %vm866, 1.0, %v378
      %v872 = vsel %vm866, 1.0, %v380
      %v873 = vsel %vm866, 1.0, %v382
      %v874 = vsel %vm866, 1.0, %v384
      %v875 = vsel %vm866, 1.0, %v386
      %v876 = vsel %vm866, 1.0, %v388
      %v877 = vsel %vm866, 1.0, %v390
      %v878 = vsel %vm866, 1.0, %v392
      %v879 = vsel %vm866, 1.0, %v394
      %vm880 = vcmask 15360
      %v881 = vsel %vm880, %v867, %v828
      %v882 = vsel %vm880, %v868, %v830
      %v883 = vsel %vm880, %v869, %v832
      %v884 = vsel %vm880, %v870, %v834
      %v885 = vsel %vm880, %v871, %v836
      %v886 = vsel %vm880, %v872, %v838
      %v887 = vsel %vm880, %v873, %v840
      %v888 = vsel %vm880, %v874, %v842
      %v889 = vsel %vm880, %v875, %v844
      %v890 = vsel %vm880, %v876, %v846
      %v891 = vsel %vm880, %v877, %v848
      %v892 = vsel %vm880, %v878, %v850
      %v893 = vsel %vm880, %v879, %v852
      %894 = vxpose.xlu0.b32.start [1/16] %v881, 128
      %895 = vxpose.xlu0.b32.cont [2/16] %v882, 128
      %896 = vxpose.xlu0.b32.cont [3/16] %v883, 128
      %897 = vxpose.xlu0.b32.cont [4/16] %v884, 128
      %898 = vxpose.xlu0.b32.cont [5/16] %v885, 128
      %899 = vxpose.xlu0.b32.cont [6/16] %v886, 128
      %900 = vxpose.xlu0.b32.cont [7/16] %v887, 128
      %901 = vxpose.xlu0.b32.cont [8/16] %v888, 128
      %902 = vxpose.xlu0.b32.cont [9/16] %v889, 128
      %903 = vxpose.xlu0.b32.cont [10/16] %v890, 128
      %904 = vxpose.xlu0.b32.cont [11/16] %v891, 128
      %905 = vxpose.xlu0.b32.cont [12/16] %v892, 128
      %906 = vxpose.xlu0.b32.cont [13/16] %v893, 128
      %907 = vxpose.xlu0.b32.cont [14/16] 0.0, 128
      %908 = vxpose.xlu0.b32.cont [15/16] 0.0, 128
      %909 = vxpose.xlu0.b32.end [16/16] 0.0, 128
      %v910 = vpop.trf.xlu0
      %v911 = vpop.trf.xlu0
      %v912 = vpop.trf.xlu0
      %v913 = vpop.trf.xlu0
      %v914 = vpop.trf.xlu0
      %v915 = vpop.trf.xlu0
      %v916 = vpop.trf.xlu0
      %v917 = vpop.trf.xlu0
      %v918 = vpop.trf.xlu0
      %v919 = vpop.trf.xlu0
      %v920 = vpop.trf.xlu0
      %v921 = vpop.trf.xlu0
      %v922 = vpop.trf.xlu0
      %v923 = vpop.trf.xlu0
      %v924 = vpop.trf.xlu0
      %v925 = vpop.trf.xlu0
      %vm926 = vcmask 850944
      %v928 = vsel %vm926, %v910, 0
      %930 = vmatprep.subr.mxu0 0.0
      %931 = vmatpush1.msra.mxu0 %v801
      %932 = vmatprep.subr.mxu0 0.0
      %933 = vmatpush1.msra.mxu0 %v802
      %934 = vmatprep.subr.mxu0 0.0
      %935 = vmatpush1.msra.mxu0 %v803
      %936 = vmatprep.subr.mxu0 0.0
      %937 = vmatpush1.msra.mxu0 %v804
      %938 = vmatprep.subr.mxu0 0.0
      %939 = vmatpush1.msra.mxu0 %v805
      %940 = vmatprep.subr.mxu0 0.0
      %941 = vmatpush1.msra.mxu0 %v806
      %942 = vmatprep.subr.mxu0 0.0
      %943 = vmatpush1.msra.mxu0 %v807
      %944 = vmatprep.subr.mxu0 0.0
      %945 = vmatpush1.msra.mxu0 %v808
      %946 = vmatprep.subr.mxu0 0.0
      %947 = vmatpush1.msra.mxu0 %v809
      %948 = vmatprep.subr.mxu0 0.0
      %949 = vmatpush1.msra.mxu0 %v810
      %950 = vmatprep.subr.mxu0 0.0
      %951 = vmatpush1.msra.mxu0 %v811
      %952 = vmatprep.subr.mxu0 0.0
      %953 = vmatpush1.msra.mxu0 %v812
      %954 = vmatprep.subr.mxu0 0.0
      %955 = vmatpush1.msra.mxu0 %v813
      %956 = vmatprep.subr.mxu0 0.0
      %957 = vmatpush1.msra.mxu0 0.0
      %958 = vmatprep.subr.mxu0 0.0
      %959 = vmatpush1.msra.mxu0 0.0
      %960 = vmatprep.subr.mxu0 0.0
      %961 = vmatpush1.msra.mxu0 0.0
      %962 = vmatprep.subr.mxu0 0.0
      %963 = vmatpush1.msra.mxu0 0.0
      %964 = vmatprep.subr.mxu0 0.0
      %965 = vmatpush1.msra.mxu0 0.0
      %966 = vmatprep.subr.mxu0 0.0
      %967 = vmatpush1.msra.mxu0 0.0
      %968 = vmatprep.subr.mxu0 0.0
      %969 = vmatpush1.msra.mxu0 0.0
      %970 = vmatprep.subr.mxu0 0.0
      %971 = vmatpush1.msra.mxu0 0.0
      %972 = vmatprep.subr.mxu0 0.0
      %973 = vmatpush1.msra.mxu0 0.0
      %974 = vmatprep.subr.mxu0 0.0
      %975 = vmatpush1.msra.mxu0 0.0
      %976 = vmatprep.subr.mxu0 0.0
      %977 = vmatpush1.msra.mxu0 0.0
      %978 = vmatprep.subr.mxu0 0.0
      %979 = vmatpush1.msra.mxu0 0.0
      %980 = vmatprep.subr.mxu0 0.0
      %981 = vmatpush1.msra.mxu0 0.0
      %982 = vmatprep.subr.mxu0 0.0
      %983 = vmatpush1.msra.mxu0 0.0
      %984 = vmatprep.subr.mxu0 0.0
      %985 = vmatpush1.msra.mxu0 0.0
      %986 = vmatprep.subr.mxu0 0.0
      %987 = vmatpush1.msra.mxu0 0.0
      %988 = vmatprep.subr.mxu0 0.0
      %989 = vmatpush1.msra.mxu0 0.0
      %990 = vmatprep.subr.mxu0 0.0
      %991 = vmatpush1.msra.mxu0 0.0
      %992 = vmatprep.subr.mxu0 0.0
      %993 = vmatpush1.msra.mxu0 0.0
      %994 = vmatprep.mubr.f32.mxu0 0.0
      %995 = vmatmul.mubr.f32.gmra.mrb[0].mxu0 %v928
      %v996 = vpop.f32.mrb[0].mxu0
      %v997 = vadd.f32 0.0, %v996
      %v998 = vpop.f32.mrb[0].mxu0
      %999 = vdwg.mxu0
      %v1000 = vld [vmem:[%s218] sm:$0x7]
      %v1001 = vadd.f32 %v1000, %v997
      %vm1002 = vcmask 116736
      %1003 = vst.msk [vmem:[%s218] sm:$0x7] %vm1002, %v1001
      %p1004 = scmp.lt.s32.totalorder %s18, 1
      %s1005 = scalar_select %p1004, %s18, 1
      %s1006 = smul.addr %s1005, 4
      %s1007 = scalar_lea.vmem %s3, %s1006
      // Predicated region
      $region37: #{tpu_custom_call.1} parent=31 // pred_check
        %p1008 = pneg %p121
      $region38: #{tpu_custom_call.1} parent=31 // pred_check_branch
        %1010 = sbr.rel (%p1008) target = $region40
      $region39: #{tpu_custom_call.1} parent=31 // pred_region
        _
      $region40: #{tpu_custom_call.1} parent=31 // pred_fallthru
        _
    $region32: #{tpu_custom_call.1} parent=5 // pred_fallthru
      _
    %p1011 = scmp.le.s32.totalorder 2, %s9
    // Predicated region
    $region41: #{tpu_custom_call.1} parent=5 // pred_check
      %p1012 = pneg %p1011
    $region42: #{tpu_custom_call.1} parent=5 // pred_check_branch
      %1014 = sbr.rel (%p1012) target = $region44
    $region43: #{tpu_custom_call.1} parent=5 // pred_region
      %s1015 = ssub.s32 %s9, 2
      // Predicated region
      $region45: #{tpu_custom_call.1} parent=43 // pred_check
        %p1016 = pneg %p127
      $region46: #{tpu_custom_call.1} parent=43 // pred_check_branch
        %1018 = sbr.rel (%p1016) target = $region48
      $region47: #{tpu_custom_call.1} parent=43 // pred_region
        %p1019 = scmp.lt.s32.totalorder %s20, 1
        %s1020 = scalar_select %p1019, %s20, 1
        %s1021 = smul.addr %s1020, 4
        %s1022 = scalar_lea.vmem %s3, %s1021
      $region48: #{tpu_custom_call.1} parent=43 // pred_fallthru
        _
    $region44: #{tpu_custom_call.1} parent=5 // pred_fallthru
      _
  $region6: #{tpu_custom_call.1} parent=0 // loop_footer
    %s13 = sadd.s32 1, %s9
  $region7: #{tpu_custom_call.1} parent=0 // loop_footer_branch
    %8 = sbr.rel target = $region3
  $region8: #{tpu_custom_call.1} parent=0 // loop_exit
    _

</llo_original>
